<compile_context>
chip_gen: v7x
topology: tpu7x:2x2x1
jax: 0.10.0
libtpu: 0.0.40
codegen_flags: <defaults>
</compile_context>

<pallas_src>
import functools

import jax
import jax.numpy as jnp
from jax.experimental import pallas as pl
from jax.experimental.pallas import tpu as pltpu


def _round_up(n, m):
    return ((n + m - 1) // m) * m


# --------------------------------------------------------------------------
# Kernels
# --------------------------------------------------------------------------
def _convex_relu_kernel(*refs, has_pool):
    """ConvexMLPBlock relu path (+ optionally fused AdaptiveAvgPool1d).

    has_pool=True : x(tb,HW,Din), pool(Din,D), wg(D,P), bg(1,P), w(P,D,Cpad), out(tb,Cpad)
    has_pool=False: x(tb,HW,D),                wg(D,P), bg(1,P), w(P,D,Cpad), out(tb,Cpad)
    The 1/(HW*P) scale is folded into w at prepare time -> epilogue is a store.
    """
    if has_pool:
        x_ref, pool_ref, wg_ref, bg_ref, w_ref, out_ref = refs
    else:
        x_ref, wg_ref, bg_ref, w_ref, out_ref = refs
    tb, hw, d_in = x_ref.shape
    cdt = wg_ref.dtype
    p = wg_ref.shape[1]

    x2 = x_ref[...].reshape(tb * hw, d_in)            # leading-dim merge (free)
    if has_pool:
        # AdaptiveAvgPool1d over the feature axis, fused: one (tb*HW,Din)@(Din,D)
        # matmul in VMEM; removes a full HBM round-trip of the activations.
        x2 = jnp.dot(x2, pool_ref[...], preferred_element_type=jnp.float32)
    x2 = x2.astype(cdt)                               # no-op when dtypes match
    d = x2.shape[1]

    # Gating: compare >0 on the f32-accumulated pre-activation (bf16-safe).
    s = jnp.dot(x2, wg_ref[...], preferred_element_type=jnp.float32) + bg_ref[...]
    sign3 = (s > 0).astype(cdt).reshape(tb, hw, p)    # exact 0/1
    x3 = x2.reshape(tb, hw, d)

    # Z[b,p,d] = sum_h sign[b,h,p] * x[b,h,d]   (batched over tb, f32 acc)
    z = jnp.einsum("bhp,bhd->bpd", sign3, x3,
                   preferred_element_type=jnp.float32)            # (tb, P, D)

    # out[b,c] = sum_p Z[b,p,:] @ Wscaled[p,:,:] — single batched dot over p,
    # then a cheap leading-axis reduce (scale already folded into W).
    zt = jnp.swapaxes(z, 0, 1).astype(w_ref.dtype)                # (P, tb, D)
    acc = jnp.einsum("pbd,pdc->pbc", zt, w_ref[...],
                     preferred_element_type=jnp.float32)          # (P, tb, Cpad)
    out_ref[...] = jnp.sum(acc, axis=0).astype(out_ref.dtype)


def _convex_linear_kernel(x_ref, w_ref, out_ref):
    """ConvexMLPBlock 'linear' path.  The HW-sum commutes with the (linear)
    AdaptiveAvgPool1d and the linear map, so pooling and the 1/(HW*P) scale are
    both folded into w at prepare time: out = (sum_h x) @ w_folded."""
    xs = jnp.sum(x_ref[...].astype(jnp.float32), axis=1)          # (tb, Din)
    acc = jnp.dot(xs.astype(w_ref.dtype), w_ref[...],
                  preferred_element_type=jnp.float32)             # (tb, Cpad)
    out_ref[...] = acc.astype(out_ref.dtype)


# --------------------------------------------------------------------------
# Parameter preparation (one-time, out of the hot path)
# --------------------------------------------------------------------------
def prepare_convex_mlp_params(lin_weight, arr_weight=None, arr_bias=None, *,
                              num_classes, hw, activation="linear",
                              compute_dtype=jnp.float32, pool_matrix=None):
    """Rearranges / pads / casts ConvexMLPBlock weights once at load time.

    pool_matrix: optional (D_in, D) AdaptiveAvgPool1d matrix.  For 'relu' it is
    kept as a kernel input (pooling fused in-kernel); for 'linear' it is folded
    directly into the effective weight.  The 1/(HW*embed_dim) scale is folded
    into the weights in both cases.
    """
    C = num_classes
    P = lin_weight.shape[0] // C            # embed_dim (== 1 for 'linear')
    D = lin_weight.shape[1]
    assert lin_weight.shape == (P * C, D)
    C_pad = _round_up(C, 128)               # lane-dense output / matmul N dim
    scale = 1.0 / (hw * P)

    # linear_map.weight (P*C, D) -> w_pdc[p, d, c] == weight[p*C + c, d]; pre-scaled.
    w_pdc = lin_weight.reshape(P, C, D).transpose(0, 2, 1) * scale   # (P, D, C)

    use_relu = activation == "relu"
    params = {"use_relu": use_relu, "P": P, "C": C, "C_pad": C_pad, "D": D,
              "hw": hw, "compute_dtype": compute_dtype}
    if use_relu:
        assert arr_weight is not None and arr_bias is not None
        params["wg_t"] = jnp.asarray(arr_weight).T.astype(compute_dtype)      # (D, P)
        params["bg"] = jnp.asarray(arr_bias).reshape(1, P).astype(jnp.float32)
        w_pad = jnp.zeros((P, D, C_pad), compute_dtype)
        params["w_pdc"] = w_pad.at[:, :, :C].set(w_pdc.astype(compute_dtype))
        if pool_matrix is not None:
            params["pool"] = jnp.asarray(pool_matrix).astype(compute_dtype)   # (Din, D)
            params["fuse_pool"] = True
            params["D_in"] = int(params["pool"].shape[0])
        else:
            params["fuse_pool"] = False
            params["D_in"] = D
    else:
        weff = w_pdc.sum(axis=0)                                   # (D, C), scaled
        if pool_matrix is not None:
            weff = jnp.asarray(pool_matrix, jnp.float32) @ weff    # (Din, C)
        d_in = int(weff.shape[0])
        w_pad = jnp.zeros((d_in, C_pad), compute_dtype)
        params["weff"] = w_pad.at[:, :C].set(weff.astype(compute_dtype))
        params["fuse_pool"] = pool_matrix is not None
        params["D_in"] = d_in
    return params


# --------------------------------------------------------------------------
# VMEM budgeting / batch tiling
# --------------------------------------------------------------------------
def _vmem_capacity_bytes():
    try:
        return int(pltpu.get_tpu_info().vmem_capacity_bytes)
    except Exception:
        return 64 << 20      # conservative default (v7x per-TC VMEM)


def _estimate_vmem_bytes(tb, hw, d_in, d, p, c_pad, x_item, w_item,
                         fuse_pool, use_relu):
    """Rough per-step VMEM footprint: double-buffered I/O blocks, doubled
    grid-invariant weight blocks, plus lane/sublane-padded f32 temporaries."""
    lane = lambda n: _round_up(max(int(n), 1), 128)
    sub = lambda n: _round_up(max(int(n), 1), 8)
    rows = tb * hw
    total = 2 * tb * sub(hw) * lane(d_in) * x_item          # x tile (double-buffered)
    total += 2 * sub(tb) * lane(c_pad) * 4                  # out tile
    if use_relu:
        total += 2 * sub(d) * lane(p) * w_item              # wg
        total += 2 * 8 * lane(p) * 4                        # bg
        total += 2 * p * sub(d) * lane(c_pad) * w_item      # w_pdc
        if fuse_pool:
            total += 2 * sub(d_in) * lane(d) * w_item       # pool matrix
            total += sub(rows) * lane(d) * (4 + w_item)     # pooled x (f32 + cast)
        total += sub(rows) * lane(p) * (4 + w_item)         # pre-act + sign
        total += 2 * tb * sub(p) * lane(d) * 4              # z and z^T
        total += p * sub(tb) * lane(c_pad) * 4              # per-p partial outputs
    else:
        total += 2 * sub(d_in) * lane(c_pad) * w_item       # folded weight
        total += sub(tb) * (lane(d_in) + lane(c_pad)) * 4   # row-sum + acc
    return total


def _pick_batch_tile(B, est_fn, budget, target_steps=4):
    """Ceil-div batch tiling: tb is a multiple of 8 (sublane-dense output
    block), targeting ~`target_steps` grid steps, shrunk in steps of 8 until
    the footprint fits the budget.  Tiny batches (<= 8) use a single step."""
    if B <= 8:
        return B
    tb = min(_round_up(pl.cdiv(B, target_steps), 8), _round_up(B, 8))
    while tb > 8 and est_fn(tb) > budget:
        tb -= 8
    return max(tb, 8)


# --------------------------------------------------------------------------
# Forward wrappers
# --------------------------------------------------------------------------
def convex_mlp_forward(x, params):
    """ConvexMLPBlock.forward (non-burer paths).  If `params` were prepared
    with a pool_matrix this is the full TransformerTransfer.forward (pooling
    fused), all in a single pallas_call."""
    B, HW, D_in = x.shape
    assert HW == params["hw"], "HW is baked into the folded scale at prepare time"
    assert D_in == params["D_in"], "feature dim mismatch vs prepared params"
    C, C_pad, P, D = params["C"], params["C_pad"], params["P"], params["D"]
    cdt = params["compute_dtype"]
    use_relu = params["use_relu"]
    fuse_pool = params["fuse_pool"]
    x_item = jnp.dtype(x.dtype).itemsize
    w_item = jnp.dtype(cdt).itemsize

    cap = _vmem_capacity_bytes()
    budget = min(int(cap * 0.7), 48 << 20)
    est_fn = lambda t: _estimate_vmem_bytes(
        t, HW, D_in, D, P, C_pad, x_item, w_item, fuse_pool, use_relu)
    tb = _pick_batch_tile(B, est_fn, budget)
    grid = (pl.cdiv(B, tb),)
    vmem_limit = int(min(cap * 0.8, max(32 << 20, 2 * est_fn(tb))))

    if use_relu:
        kernel = functools.partial(_convex_relu_kernel, has_pool=fuse_pool)
        in_specs = [pl.BlockSpec((tb, HW, D_in), lambda b: (b, 0, 0))]
        args = [x]
        if fuse_pool:
            in_specs.append(pl.BlockSpec((D_in, D), lambda b: (0, 0)))
            args.append(params["pool"])
        in_specs += [
            pl.BlockSpec((D, P), lambda b: (0, 0)),
            pl.BlockSpec((1, P), lambda b: (0, 0)),
            pl.BlockSpec((P, D, C_pad), lambda b: (0, 0, 0)),
        ]
        args += [params["wg_t"], params["bg"], params["w_pdc"]]
        flops = 4 * B * HW * D * P + 2 * B * P * D * C_pad
        if fuse_pool:
            flops += 2 * B * HW * D_in * D
    else:
        kernel = _convex_linear_kernel
        in_specs = [
            pl.BlockSpec((tb, HW, D_in), lambda b: (b, 0, 0)),
            pl.BlockSpec((D_in, C_pad), lambda b: (0, 0)),
        ]
        args = [x, params["weff"]]
        flops = B * HW * D_in + 2 * B * D_in * C_pad

    bytes_accessed = int(x.nbytes + B * C_pad * 4 +
                         sum(int(a.nbytes) for a in args[1:]))
    cost = pl.CostEstimate(flops=int(flops), transcendentals=0,
                           bytes_accessed=bytes_accessed)

    out_padded = pl.pallas_call(
        kernel,
        out_shape=jax.ShapeDtypeStruct((B, C_pad), jnp.float32),
        grid_spec=pltpu.PrefetchScalarGridSpec(
            num_scalar_prefetch=0,
            grid=grid,
            in_specs=in_specs,
            out_specs=pl.BlockSpec((tb, C_pad), lambda b: (b, 0)),
        ),
        compiler_params=pltpu.CompilerParams(
            dimension_semantics=("parallel",),
            vmem_limit_bytes=vmem_limit),
        cost_estimate=cost,
    )(*args)
    return out_padded[:, :C]


def transformer_transfer_forward(x_raw, params):
    """TransformerTransfer.forward: the AdaptiveAvgPool1d matmul is fused into
    the Pallas kernel ('relu') or folded into the weights ('linear'), so the
    whole forward is one pallas_call.  (.detach() only affects autograd.)"""
    return convex_mlp_forward(x_raw, params)


def _adaptive_avg_pool1d_matrix(in_len, out_len, dtype=jnp.float32):
    """(in_len, out_len) matrix M s.t. x @ M == nn.AdaptiveAvgPool1d(out_len)(x)."""
    rows = []
    for i in range(out_len):
        start = (i * in_len) // out_len
        end = -((-(i + 1) * in_len) // out_len)   # ceil((i+1)*in_len/out_len)
        w = 1.0 / (end - start)
        rows.append([w if start <= j < end else 0.0 for j in range(in_len)])
    return jnp.asarray(rows, dtype).T             # (in_len, out_len)


# --------------------------------------------------------------------------
# Pure-JAX reference (mirrors the PyTorch forward) for verification
# --------------------------------------------------------------------------
def convex_mlp_reference(x, lin_weight, arr_weight, arr_bias,
                         num_classes, activation):
    B, HW, D = x.shape
    P = lin_weight.shape[0] // num_classes
    lin = (x @ lin_weight.T).reshape(B, HW, P, num_classes)
    if activation == "relu":
        sign = ((x @ arr_weight.T + arr_bias) > 0).astype(jnp.float32)
        preds = (1.0 / HW) * jnp.einsum("bhp,bhpc->bc", sign, lin)
    else:
        preds = (1.0 / HW) * jnp.sum(lin, axis=(1, 2))
    return preds / P


# --------------------------------------------------------------------------
if __name__ == "__main__":
    key = jax.random.PRNGKey(0)
    B, h, D, neurons, C = 2, 4, 32, 8, 10
    HW = h * h
    D_in = 48          # feature dim before TransformerTransfer's AdaptiveAvgPool1d
    k1, k2, k3, k4, k5, k6 = jax.random.split(key, 6)

    x = jax.random.normal(k1, (B, HW, D), jnp.float32)
    arr_w = 0.5 * jax.random.normal(k2, (neurons, D), jnp.float32)
    arr_b = 0.1 * jax.random.normal(k3, (neurons,), jnp.float32)
    lin_w_relu = 0.1 * jax.random.normal(k4, (neurons * C, D), jnp.float32)
    lin_w_lin = 0.1 * jax.random.normal(k5, (1 * C, D), jnp.float32)

    # --- ConvexMLPBlock, activation='relu', f32 ---
    params_relu = prepare_convex_mlp_params(
        lin_w_relu, arr_w, arr_b, num_classes=C, hw=HW, activation="relu",
        compute_dtype=jnp.float32)
    out_relu = convex_mlp_forward(x, params_relu)
    jax.block_until_ready(out_relu)
    ref_relu = convex_mlp_reference(x, lin_w_relu, arr_w, arr_b, C, "relu")
    assert out_relu.shape == (B, C)
    assert jnp.allclose(out_relu, ref_relu, atol=1e-5, rtol=1e-5), "relu mismatch"

    # --- ConvexMLPBlock, activation='linear' (module defaults), f32 ---
    params_lin = prepare_convex_mlp_params(
        lin_w_lin, num_classes=C, hw=HW, activation="linear",
        compute_dtype=jnp.float32)
    out_lin = convex_mlp_forward(x, params_lin)
    jax.block_until_ready(out_lin)
    ref_lin = convex_mlp_reference(x, lin_w_lin, None, None, C, "linear")
    assert out_lin.shape == (B, C)
    assert jnp.allclose(out_lin, ref_lin, atol=1e-5, rtol=1e-5), "linear mismatch"

    # --- ConvexMLPBlock, relu, bf16 MXU feed with f32 accumulation ---
    x_bf = x.astype(jnp.bfloat16)
    params_bf = prepare_convex_mlp_params(
        lin_w_relu, arr_w, arr_b, num_classes=C, hw=HW, activation="relu",
        compute_dtype=jnp.bfloat16)
    out_bf = convex_mlp_forward(x_bf, params_bf)
    jax.block_until_ready(out_bf)
    ref_bf = convex_mlp_reference(
        x_bf.astype(jnp.float32),
        lin_w_relu.astype(jnp.bfloat16).astype(jnp.float32),
        arr_w.astype(jnp.bfloat16).astype(jnp.float32),
        arr_b.astype(jnp.float32), C, "relu")
    assert jnp.allclose(out_bf, ref_bf, atol=1e-2, rtol=5e-2), "bf16 mismatch"

    # --- Full TransformerTransfer (relu): AdaptiveAvgPool1d fused in-kernel,
    #     non-divisor batch (B2=20 -> tb=8, grid=3, clipped tail of 4) ---
    B2 = 20
    x_raw = jax.random.normal(k6, (B2, HW, D_in), jnp.float32)
    pool_m = _adaptive_avg_pool1d_matrix(D_in, D, jnp.float32)
    params_tt = prepare_convex_mlp_params(
        lin_w_relu, arr_w, arr_b, num_classes=C, hw=HW, activation="relu",
        compute_dtype=jnp.float32, pool_matrix=pool_m)
    out_tt = transformer_transfer_forward(x_raw, params_tt)
    jax.block_until_ready(out_tt)
    x_pooled = jnp.einsum("bhi,io->bho", x_raw, pool_m)
    ref_tt = convex_mlp_reference(x_pooled, lin_w_relu, arr_w, arr_b, C, "relu")
    assert out_tt.shape == (B2, C)
    assert jnp.allclose(out_tt, ref_tt, atol=1e-4, rtol=1e-4), "transfer relu mismatch"

    # --- Full TransformerTransfer (linear): pool folded into the weight ---
    params_tt_lin = prepare_convex_mlp_params(
        lin_w_lin, num_classes=C, hw=HW, activation="linear",
        compute_dtype=jnp.float32, pool_matrix=pool_m)
    out_tt_lin = transformer_transfer_forward(x_raw, params_tt_lin)
    jax.block_until_ready(out_tt_lin)
    ref_tt_lin = convex_mlp_reference(x_pooled, lin_w_lin, None, None, C, "linear")
    assert out_tt_lin.shape == (B2, C)
    assert jnp.allclose(out_tt_lin, ref_tt_lin, atol=1e-4, rtol=1e-4), \
        "transfer linear mismatch"

    print("KERNEL_OK")
</pallas_src>

<mosaic_0001>
module attributes {stable_mosaic.version = 11 : i64} {
  func.func @_convex_relu_kernel(%arg0: i32, %arg1: memref<2x16x32xf32, #tpu.memory_space<vmem>>, %arg2: memref<32x8xf32, #tpu.memory_space<vmem>>, %arg3: memref<1x8xf32, #tpu.memory_space<vmem>>, %arg4: memref<8x32x128xf32, #tpu.memory_space<vmem>>, %arg5: memref<2x128xf32, #tpu.memory_space<vmem>>) attributes {dimension_semantics = [#tpu.dimension_semantics<parallel>], iteration_bounds = array<i64: 1>, scalar_prefetch = 0 : i64, scratch_operands = 0 : i64, tpu.core_type = #tpu.core_type<tc>, window_params = [{transform_indices = @transform_0, window_bounds = array<i64: 2, 16, 32>}, {pipeline_mode = #tpu.pipeline_mode<synchronous>, transform_indices = @transform_1, window_bounds = array<i64: 32, 8>}, {pipeline_mode = #tpu.pipeline_mode<synchronous>, transform_indices = @transform_2, window_bounds = array<i64: 1, 8>}, {pipeline_mode = #tpu.pipeline_mode<synchronous>, transform_indices = @transform_3, window_bounds = array<i64: 8, 32, 128>}, {transform_indices = @transform_4, window_bounds = array<i64: 2, 128>}]} {
    %c0 = arith.constant 0 : index
    %c0_0 = arith.constant 0 : index
    %c0_1 = arith.constant 0 : index
    %0 = vector.load %arg1[%c0, %c0_0, %c0_1] : memref<2x16x32xf32, #tpu.memory_space<vmem>>, vector<2x16x32xf32>
    %1 = vector.shape_cast %0 : vector<2x16x32xf32> to vector<32x32xf32>
    %c0_2 = arith.constant 0 : index
    %c0_3 = arith.constant 0 : index
    %2 = vector.load %arg2[%c0_2, %c0_3] : memref<32x8xf32, #tpu.memory_space<vmem>>, vector<32x8xf32>
    %cst = arith.constant dense<0.000000e+00> : vector<32x8xf32>
    %3 = tpu.matmul %1, %2, %cst {dimension_numbers = #tpu.dot_dimension_numbers<[1], [0], [0], [1], [0, 0, 1, 1], [], []>} : vector<32x32xf32>, vector<32x8xf32>, vector<32x8xf32> -> vector<32x8xf32>
    %c0_4 = arith.constant 0 : index
    %c0_5 = arith.constant 0 : index
    %4 = vector.load %arg3[%c0_4, %c0_5] : memref<1x8xf32, #tpu.memory_space<vmem>>, vector<1x8xf32>
    %5 = vector.broadcast %4 : vector<1x8xf32> to vector<32x8xf32>
    %6 = arith.addf %3, %5 : vector<32x8xf32>
    %cst_6 = arith.constant 0.000000e+00 : f32
    %7 = vector.broadcast %cst_6 : f32 to vector<32x8xf32>
    %8 = arith.cmpf ogt, %6, %7 : vector<32x8xf32>
    %9 = arith.extui %8 : vector<32x8xi1> to vector<32x8xi32>
    %10 = arith.sitofp %9 : vector<32x8xi32> to vector<32x8xf32>
    %11 = vector.shape_cast %10 : vector<32x8xf32> to vector<2x16x8xf32>
    %12 = vector.shape_cast %1 : vector<32x32xf32> to vector<2x16x32xf32>
    "tpu.trace_start"() <{level = 10 : i32, message = "bhp,bhd->bpd"}> : () -> ()
    %cst_7 = arith.constant dense<0.000000e+00> : vector<2x8x32xf32>
    %13 = tpu.matmul %11, %12, %cst_7 {dimension_numbers = #tpu.dot_dimension_numbers<[1], [1], [2], [2], [0, 0, 0, 2, 1, 2], [0], [0]>} : vector<2x16x8xf32>, vector<2x16x32xf32>, vector<2x8x32xf32> -> vector<2x8x32xf32>
    "tpu.trace_stop"() : () -> ()
    %14 = tpu.transpose %13, [1, 0, 2] : vector<2x8x32xf32> -> vector<8x2x32xf32>
    %c0_8 = arith.constant 0 : index
    %c0_9 = arith.constant 0 : index
    %c0_10 = arith.constant 0 : index
    %15 = vector.load %arg4[%c0_8, %c0_9, %c0_10] : memref<8x32x128xf32, #tpu.memory_space<vmem>>, vector<8x32x128xf32>
    "tpu.trace_start"() <{level = 10 : i32, message = "pbd,pdc->pbc"}> : () -> ()
    %cst_11 = arith.constant dense<0.000000e+00> : vector<8x2x128xf32>
    %16 = tpu.matmul %14, %15, %cst_11 {dimension_numbers = #tpu.dot_dimension_numbers<[2], [1], [1], [2], [0, 0, 0, 1, 1, 2], [0], [0]>} : vector<8x2x32xf32>, vector<8x32x128xf32>, vector<8x2x128xf32> -> vector<8x2x128xf32>
    "tpu.trace_stop"() : () -> ()
    %cst_12 = arith.constant dense<0.000000e+00> : vector<2x128xf32>
    %17 = vector.multi_reduction <add>, %16, %cst_12 [0] : vector<8x2x128xf32> to vector<2x128xf32>
    %c0_13 = arith.constant 0 : index
    %c0_14 = arith.constant 0 : index
    %18 = vector.load %arg5[%c0_13, %c0_14] : memref<2x128xf32, #tpu.memory_space<vmem>>, vector<2x128xf32>
    tpu.vector_store %arg5[%c0_13, %c0_14], %17 {strides = array<i32>} : memref<2x128xf32, #tpu.memory_space<vmem>>, vector<2x128xf32>,
    return
  }
  func.func @transform_0(%arg0: i32) -> (i32, i32, i32) {
    %c0_i32 = arith.constant 0 : i32
    %c0_i32_0 = arith.constant 0 : i32
    %c0_i32_1 = arith.constant 0 : i32
    return %arg0, %c0_i32, %c0_i32_0 : i32, i32, i32
  }
  func.func @transform_1(%arg0: i32) -> (i32, i32) {
    %c0_i32 = arith.constant 0 : i32
    %c0_i32_0 = arith.constant 0 : i32
    %c0_i32_1 = arith.constant 0 : i32
    return %c0_i32, %c0_i32_0 : i32, i32
  }
  func.func @transform_2(%arg0: i32) -> (i32, i32) {
    %c0_i32 = arith.constant 0 : i32
    %c0_i32_0 = arith.constant 0 : i32
    %c0_i32_1 = arith.constant 0 : i32
    return %c0_i32, %c0_i32_0 : i32, i32
  }
  func.func @transform_3(%arg0: i32) -> (i32, i32, i32) {
    %c0_i32 = arith.constant 0 : i32
    %c0_i32_0 = arith.constant 0 : i32
    %c0_i32_1 = arith.constant 0 : i32
    %c0_i32_2 = arith.constant 0 : i32
    return %c0_i32, %c0_i32_0, %c0_i32_1 : i32, i32, i32
  }
  func.func @transform_4(%arg0: i32) -> (i32, i32) {
    %c0_i32 = arith.constant 0 : i32
    %c0_i32_0 = arith.constant 0 : i32
    return %arg0, %c0_i32 : i32, i32
  }
}

</mosaic_0001>

<llo_original>
// kernel: tpu_custom_call.1
$region0: #{tpu_custom_call.1}
  #allocation0 [shape = 'u32[]', space=smem, size = 0x4, offset = 0x4, fixed_abs, tag = 'smem constant byte address 0x4 - core index']
  #allocation1 [shape = 'u32[144,128]{1,0:T(1,128)}', space=vmem, size = 0x12000, scoped, tag = 'internal scratch']
  %s0 = inlined_call_operand.vmem [shape: f32[2,16,32], index: 0, kind: input, shape index: {}]
  %s1 = inlined_call_operand.vmem [shape: f32[32,8], index: 1, kind: input, shape index: {}]
  %s2 = inlined_call_operand.vmem [shape: f32[1,8], index: 2, kind: input, shape index: {}]
  %s3 = inlined_call_operand.hbm [shape: f32[8,32,128], index: 3, kind: input, shape index: {}]
  %s4 = inlined_call_operand.hbm [shape: f32[2,128], index: 4, kind: output, shape index: {}]
  %s5 = sld [smem:[#allocation0]]
  $region30: #{tpu_custom_call.1} parent=0
    _
  %s7 = ssub.s32 1, %s5
  %s8 = scalar_select 0, %s7, %s5
  $region1: #{tpu_custom_call.1} parent=0
    #allocation2 [shape = 'u8[131072]{0}', space=vmem, size = 0x20000, scoped, tag = 'input window, operand 3, single buffered']
    #allocation3 [shape = 's32[1]{0}', space=sflag, size = 0x4, scoped, tag = 'scoped memory for tpu_custom_call.1']
    #allocation4 [shape = 's32[1]{0}', space=sflag, size = 0x4, scoped, tag = 'scoped memory for tpu_custom_call.1']
    #allocation5 [shape = 'u8[1024]{0}', space=vmem, size = 0x400, scoped, tag = 'output window, operand 0, single buffered']
    %9 = vsyncpa [#allocation3], 0
    %10 = vsyncpa [#allocation4], 0
    // Predicated region
    $region2: #{tpu_custom_call.1} parent=1 // pred_check
      _
    $region3: #{tpu_custom_call.1} parent=1 // pred_check_branch
      %12 = sbr.rel (0) target = $region5
    $region4: #{tpu_custom_call.1} parent=1 // pred_region
      _
    $region5: #{tpu_custom_call.1} parent=1 // pred_fallthru
      _
    // Predicated region
    $region6: #{tpu_custom_call.1} parent=1 // pred_check
      _
    $region7: #{tpu_custom_call.1} parent=1 // pred_check_branch
      %14 = sbr.rel (0) target = $region9
    $region8: #{tpu_custom_call.1} parent=1 // pred_region
      _
    $region9: #{tpu_custom_call.1} parent=1 // pred_fallthru
      _
    // Predicated region
    $region10: #{tpu_custom_call.1} parent=1 // pred_check
      _
    $region11: #{tpu_custom_call.1} parent=1 // pred_check_branch
      %16 = sbr.rel (0) target = $region13
    $region12: #{tpu_custom_call.1} parent=1 // pred_region
      _
    $region13: #{tpu_custom_call.1} parent=1 // pred_fallthru
      _
    // Predicated region
    $region14: #{tpu_custom_call.1} parent=1 // pred_check
      _
    $region15: #{tpu_custom_call.1} parent=1 // pred_check_branch
      %18 = sbr.rel (0) target = $region17
    $region16: #{tpu_custom_call.1} parent=1 // pred_region
      %s20 = ssub.s32 4096, 4096
      %21 = vsyncadd [#allocation3], %s20
      %s22 = sshll.u32 [#allocation2], 4
      %s23 = int_to_ptr.vmem [resolvable:$true] %s22
      %28 = dma.hbm_to_vmem [thread:$0]  %s3, 4096, %s23, [#allocation3], 128, 128, 8
    $region17: #{tpu_custom_call.1} parent=1 // pred_fallthru
      _
    // Predicated region
    $region18: #{tpu_custom_call.1} parent=1 // pred_check
      _
    $region19: #{tpu_custom_call.1} parent=1 // pred_check_branch
      %30 = sbr.rel (0) target = $region21
    $region20: #{tpu_custom_call.1} parent=1 // pred_region
      %31 = dma.done [#allocation3], 4096
    $region21: #{tpu_custom_call.1} parent=1 // pred_fallthru
      _
    %v32 = vld [vmem:[%s0] sm:$0xff]
    %v33 = vld [vmem:[%s0 + $0x8] sm:$0xff]
    %v34 = vld [vmem:[%s0 + $0x10] sm:$0xff]
    %v35 = vld [vmem:[%s0 + $0x18] sm:$0xff]
    %v36 = vld [vmem:[%s1] sm:$0xff]
    %v37 = vld [vmem:[%s1 + $0x8] sm:$0xff]
    %v38 = vld [vmem:[%s1 + $0x10] sm:$0xff]
    %v39 = vld [vmem:[%s1 + $0x18] sm:$0xff]
    %v40 = vld [vmem:[%s2] sm:$0x1]
    %v42 = vlaneseq
    %v43 = vshrl.u32 %v42, 7
    %v44 = vsub.s32 0, %v43
    %v45 = vrot.slane %v40, %v44
    %vm47 = vcmask 261120
    %v49 = vsel %vm47, %v32, 0
    %v52 = vsel %vm47, %v33, 0
    %v55 = vsel %vm47, %v34, 0
    %v58 = vsel %vm47, %v35, 0
    %60 = vmatprep.subr.mxu0 0.0
    %61 = vmatpush1.msra.mxu0 %v36
    %62 = vmatprep.subr.mxu0 0.0
    %63 = vmatpush1.msra.mxu0 %v37
    %64 = vmatprep.subr.mxu0 0.0
    %65 = vmatpush1.msra.mxu0 %v38
    %66 = vmatprep.subr.mxu0 0.0
    %67 = vmatpush1.msra.mxu0 %v39
    %68 = vmatprep.subr.mxu0 0.0
    %69 = vmatpush1.msra.mxu0 0.0
    %70 = vmatprep.subr.mxu0 0.0
    %71 = vmatpush1.msra.mxu0 0.0
    %72 = vmatprep.subr.mxu0 0.0
    %73 = vmatpush1.msra.mxu0 0.0
    %74 = vmatprep.subr.mxu0 0.0
    %75 = vmatpush1.msra.mxu0 0.0
    %76 = vmatprep.subr.mxu0 0.0
    %77 = vmatpush1.msra.mxu0 0.0
    %78 = vmatprep.subr.mxu0 0.0
    %79 = vmatpush1.msra.mxu0 0.0
    %80 = vmatprep.subr.mxu0 0.0
    %81 = vmatpush1.msra.mxu0 0.0
    %82 = vmatprep.subr.mxu0 0.0
    %83 = vmatpush1.msra.mxu0 0.0
    %84 = vmatprep.subr.mxu0 0.0
    %85 = vmatpush1.msra.mxu0 0.0
    %86 = vmatprep.subr.mxu0 0.0
    %87 = vmatpush1.msra.mxu0 0.0
    %88 = vmatprep.subr.mxu0 0.0
    %89 = vmatpush1.msra.mxu0 0.0
    %90 = vmatprep.subr.mxu0 0.0
    %91 = vmatpush1.msra.mxu0 0.0
    %92 = vmatprep.subr.mxu0 0.0
    %93 = vmatpush1.msra.mxu0 0.0
    %94 = vmatprep.subr.mxu0 0.0
    %95 = vmatpush1.msra.mxu0 0.0
    %96 = vmatprep.subr.mxu0 0.0
    %97 = vmatpush1.msra.mxu0 0.0
    %98 = vmatprep.subr.mxu0 0.0
    %99 = vmatpush1.msra.mxu0 0.0
    %100 = vmatprep.subr.mxu0 0.0
    %101 = vmatpush1.msra.mxu0 0.0
    %102 = vmatprep.subr.mxu0 0.0
    %103 = vmatpush1.msra.mxu0 0.0
    %104 = vmatprep.subr.mxu0 0.0
    %105 = vmatpush1.msra.mxu0 0.0
    %106 = vmatprep.subr.mxu0 0.0
    %107 = vmatpush1.msra.mxu0 0.0
    %108 = vmatprep.subr.mxu0 0.0
    %109 = vmatpush1.msra.mxu0 0.0
    %110 = vmatprep.subr.mxu0 0.0
    %111 = vmatpush1.msra.mxu0 0.0
    %112 = vmatprep.subr.mxu0 0.0
    %113 = vmatpush1.msra.mxu0 0.0
    %114 = vmatprep.subr.mxu0 0.0
    %115 = vmatpush1.msra.mxu0 0.0
    %116 = vmatprep.subr.mxu0 0.0
    %117 = vmatpush1.msra.mxu0 0.0
    %118 = vmatprep.subr.mxu0 0.0
    %119 = vmatpush1.msra.mxu0 0.0
    %120 = vmatprep.subr.mxu0 0.0
    %121 = vmatpush1.msra.mxu0 0.0
    %122 = vmatprep.subr.mxu0 0.0
    %123 = vmatpush1.msra.mxu0 0.0
    %124 = vmatprep.mubr.f32.mxu0 0.0
    %125 = vmatmul.mubr.f32.gmra.mrb[0].mxu0 %v49
    %v126 = vpop.f32.mrb[0].mxu0
    %v127 = vadd.f32 %v45, %v126
    %v128 = vpop.f32.mrb[0].mxu0
    %129 = vmatprep.mubr.f32.mxu0 0.0
    %130 = vmatmul.mubr.f32.gmra.mrb[0].mxu0 %v52
    %v131 = vpop.f32.mrb[0].mxu0
    %v132 = vadd.f32 %v45, %v131
    %v133 = vpop.f32.mrb[0].mxu0
    %134 = vmatprep.mubr.f32.mxu0 0.0
    %135 = vmatmul.mubr.f32.gmra.mrb[0].mxu0 %v55
    %v136 = vpop.f32.mrb[0].mxu0
    %v137 = vadd.f32 %v45, %v136
    %v138 = vpop.f32.mrb[0].mxu0
    %139 = vmatprep.mubr.f32.mxu0 0.0
    %140 = vmatmul.mubr.f32.gmra.mrb[0].mxu0 %v58
    %v141 = vpop.f32.mrb[0].mxu0
    %v142 = vadd.f32 %v45, %v141
    %v143 = vpop.f32.mrb[0].mxu0
    %144 = vdwg.mxu0
    %vm145 = vcmp.gt.f32.partialorder %v127, 0.0
    %vm146 = vcmp.gt.f32.partialorder %v132, 0.0
    %vm147 = vcmp.gt.f32.partialorder %v137, 0.0
    %vm148 = vcmp.gt.f32.partialorder %v142, 0.0
    %v149 = vsel %vm145, 1, 0
    %v150 = vsel %vm146, 1, 0
    %v151 = vsel %vm147, 1, 0
    %v152 = vsel %vm148, 1, 0
    %v153 = vcvt.s32.f32 %v149
    %v154 = vcvt.s32.f32 %v150
    %v155 = vcvt.s32.f32 %v151
    %v156 = vcvt.s32.f32 %v152
    %157 = vxpose.xlu0.b32.start [1/16] %v153, 128
    %158 = vxpose.xlu0.b32.cont [2/16] %v154, 128
    %159 = vxpose.xlu0.b32.cont [3/16] 0.0, 128
    %160 = vxpose.xlu0.b32.cont [4/16] 0.0, 128
    %161 = vxpose.xlu0.b32.cont [5/16] 0.0, 128
    %162 = vxpose.xlu0.b32.cont [6/16] 0.0, 128
    %163 = vxpose.xlu0.b32.cont [7/16] 0.0, 128
    %164 = vxpose.xlu0.b32.cont [8/16] 0.0, 128
    %165 = vxpose.xlu0.b32.cont [9/16] 0.0, 128
    %166 = vxpose.xlu0.b32.cont [10/16] 0.0, 128
    %167 = vxpose.xlu0.b32.cont [11/16] 0.0, 128
    %168 = vxpose.xlu0.b32.cont [12/16] 0.0, 128
    %169 = vxpose.xlu0.b32.cont [13/16] 0.0, 128
    %170 = vxpose.xlu0.b32.cont [14/16] 0.0, 128
    %171 = vxpose.xlu0.b32.cont [15/16] 0.0, 128
    %172 = vxpose.xlu0.b32.end [16/16] 0.0, 128
    %v173 = vpop.trf.xlu0
    %v174 = vpop.trf.xlu0
    %v175 = vpop.trf.xlu0
    %v176 = vpop.trf.xlu0
    %v177 = vpop.trf.xlu0
    %v178 = vpop.trf.xlu0
    %v179 = vpop.trf.xlu0
    %v180 = vpop.trf.xlu0
    %v181 = vpop.trf.xlu0
    %v182 = vpop.trf.xlu0
    %v183 = vpop.trf.xlu0
    %v184 = vpop.trf.xlu0
    %v185 = vpop.trf.xlu0
    %v186 = vpop.trf.xlu0
    %v187 = vpop.trf.xlu0
    %v188 = vpop.trf.xlu0
    %vm189 = vcmask 130048
    %v191 = vsel %vm189, %v173, 0
    %193 = vmatprep.subr.mxu0 0.0
    %194 = vmatpush1.msra.mxu0 %v32
    %195 = vmatprep.subr.mxu0 0.0
    %196 = vmatpush1.msra.mxu0 %v33
    %197 = vmatprep.subr.mxu0 0.0
    %198 = vmatpush1.msra.mxu0 0.0
    %199 = vmatprep.subr.mxu0 0.0
    %200 = vmatpush1.msra.mxu0 0.0
    %201 = vmatprep.subr.mxu0 0.0
    %202 = vmatpush1.msra.mxu0 0.0
    %203 = vmatprep.subr.mxu0 0.0
    %204 = vmatpush1.msra.mxu0 0.0
    %205 = vmatprep.subr.mxu0 0.0
    %206 = vmatpush1.msra.mxu0 0.0
    %207 = vmatprep.subr.mxu0 0.0
    %208 = vmatpush1.msra.mxu0 0.0
    %209 = vmatprep.subr.mxu0 0.0
    %210 = vmatpush1.msra.mxu0 0.0
    %211 = vmatprep.subr.mxu0 0.0
    %212 = vmatpush1.msra.mxu0 0.0
    %213 = vmatprep.subr.mxu0 0.0
    %214 = vmatpush1.msra.mxu0 0.0
    %215 = vmatprep.subr.mxu0 0.0
    %216 = vmatpush1.msra.mxu0 0.0
    %217 = vmatprep.subr.mxu0 0.0
    %218 = vmatpush1.msra.mxu0 0.0
    %219 = vmatprep.subr.mxu0 0.0
    %220 = vmatpush1.msra.mxu0 0.0
    %221 = vmatprep.subr.mxu0 0.0
    %222 = vmatpush1.msra.mxu0 0.0
    %223 = vmatprep.subr.mxu0 0.0
    %224 = vmatpush1.msra.mxu0 0.0
    %225 = vmatprep.subr.mxu0 0.0
    %226 = vmatpush1.msra.mxu0 0.0
    %227 = vmatprep.subr.mxu0 0.0
    %228 = vmatpush1.msra.mxu0 0.0
    %229 = vmatprep.subr.mxu0 0.0
    %230 = vmatpush1.msra.mxu0 0.0
    %231 = vmatprep.subr.mxu0 0.0
    %232 = vmatpush1.msra.mxu0 0.0
    %233 = vmatprep.subr.mxu0 0.0
    %234 = vmatpush1.msra.mxu0 0.0
    %235 = vmatprep.subr.mxu0 0.0
    %236 = vmatpush1.msra.mxu0 0.0
    %237 = vmatprep.subr.mxu0 0.0
    %238 = vmatpush1.msra.mxu0 0.0
    %239 = vmatprep.subr.mxu0 0.0
    %240 = vmatpush1.msra.mxu0 0.0
    %241 = vmatprep.subr.mxu0 0.0
    %242 = vmatpush1.msra.mxu0 0.0
    %243 = vmatprep.subr.mxu0 0.0
    %244 = vmatpush1.msra.mxu0 0.0
    %245 = vmatprep.subr.mxu0 0.0
    %246 = vmatpush1.msra.mxu0 0.0
    %247 = vmatprep.subr.mxu0 0.0
    %248 = vmatpush1.msra.mxu0 0.0
    %249 = vmatprep.subr.mxu0 0.0
    %250 = vmatpush1.msra.mxu0 0.0
    %251 = vmatprep.subr.mxu0 0.0
    %252 = vmatpush1.msra.mxu0 0.0
    %253 = vmatprep.subr.mxu0 0.0
    %254 = vmatpush1.msra.mxu0 0.0
    %255 = vmatprep.subr.mxu0 0.0
    %256 = vmatpush1.msra.mxu0 0.0
    %257 = vmatprep.mubr.f32.mxu0 0.0
    %258 = vmatmul.mubr.f32.gmra.mrb[0].mxu0 %v191
    %v259 = vpop.f32.mrb[0].mxu0
    %v260 = vadd.f32 0.0, %v259
    %v261 = vpop.f32.mrb[0].mxu0
    %262 = vdwg.mxu0
    %263 = vxpose.xlu0.b32.start [1/16] %v155, 128
    %264 = vxpose.xlu0.b32.cont [2/16] %v156, 128
    %265 = vxpose.xlu0.b32.cont [3/16] 0.0, 128
    %266 = vxpose.xlu0.b32.cont [4/16] 0.0, 128
    %267 = vxpose.xlu0.b32.cont [5/16] 0.0, 128
    %268 = vxpose.xlu0.b32.cont [6/16] 0.0, 128
    %269 = vxpose.xlu0.b32.cont [7/16] 0.0, 128
    %270 = vxpose.xlu0.b32.cont [8/16] 0.0, 128
    %271 = vxpose.xlu0.b32.cont [9/16] 0.0, 128
    %272 = vxpose.xlu0.b32.cont [10/16] 0.0, 128
    %273 = vxpose.xlu0.b32.cont [11/16] 0.0, 128
    %274 = vxpose.xlu0.b32.cont [12/16] 0.0, 128
    %275 = vxpose.xlu0.b32.cont [13/16] 0.0, 128
    %276 = vxpose.xlu0.b32.cont [14/16] 0.0, 128
    %277 = vxpose.xlu0.b32.cont [15/16] 0.0, 128
    %278 = vxpose.xlu0.b32.end [16/16] 0.0, 128
    %v279 = vpop.trf.xlu0
    %v280 = vpop.trf.xlu0
    %v281 = vpop.trf.xlu0
    %v282 = vpop.trf.xlu0
    %v283 = vpop.trf.xlu0
    %v284 = vpop.trf.xlu0
    %v285 = vpop.trf.xlu0
    %v286 = vpop.trf.xlu0
    %v287 = vpop.trf.xlu0
    %v288 = vpop.trf.xlu0
    %v289 = vpop.trf.xlu0
    %v290 = vpop.trf.xlu0
    %v291 = vpop.trf.xlu0
    %v292 = vpop.trf.xlu0
    %v293 = vpop.trf.xlu0
    %v294 = vpop.trf.xlu0
    %v296 = vsel %vm189, %v279, 0
    %298 = vmatprep.subr.mxu0 0.0
    %299 = vmatpush1.msra.mxu0 %v34
    %300 = vmatprep.subr.mxu0 0.0
    %301 = vmatpush1.msra.mxu0 %v35
    %302 = vmatprep.subr.mxu0 0.0
    %303 = vmatpush1.msra.mxu0 0.0
    %304 = vmatprep.subr.mxu0 0.0
    %305 = vmatpush1.msra.mxu0 0.0
    %306 = vmatprep.subr.mxu0 0.0
    %307 = vmatpush1.msra.mxu0 0.0
    %308 = vmatprep.subr.mxu0 0.0
    %309 = vmatpush1.msra.mxu0 0.0
    %310 = vmatprep.subr.mxu0 0.0
    %311 = vmatpush1.msra.mxu0 0.0
    %312 = vmatprep.subr.mxu0 0.0
    %313 = vmatpush1.msra.mxu0 0.0
    %314 = vmatprep.subr.mxu0 0.0
    %315 = vmatpush1.msra.mxu0 0.0
    %316 = vmatprep.subr.mxu0 0.0
    %317 = vmatpush1.msra.mxu0 0.0
    %318 = vmatprep.subr.mxu0 0.0
    %319 = vmatpush1.msra.mxu0 0.0
    %320 = vmatprep.subr.mxu0 0.0
    %321 = vmatpush1.msra.mxu0 0.0
    %322 = vmatprep.subr.mxu0 0.0
    %323 = vmatpush1.msra.mxu0 0.0
    %324 = vmatprep.subr.mxu0 0.0
    %325 = vmatpush1.msra.mxu0 0.0
    %326 = vmatprep.subr.mxu0 0.0
    %327 = vmatpush1.msra.mxu0 0.0
    %328 = vmatprep.subr.mxu0 0.0
    %329 = vmatpush1.msra.mxu0 0.0
    %330 = vmatprep.subr.mxu0 0.0
    %331 = vmatpush1.msra.mxu0 0.0
    %332 = vmatprep.subr.mxu0 0.0
    %333 = vmatpush1.msra.mxu0 0.0
    %334 = vmatprep.subr.mxu0 0.0
    %335 = vmatpush1.msra.mxu0 0.0
    %336 = vmatprep.subr.mxu0 0.0
    %337 = vmatpush1.msra.mxu0 0.0
    %338 = vmatprep.subr.mxu0 0.0
    %339 = vmatpush1.msra.mxu0 0.0
    %340 = vmatprep.subr.mxu0 0.0
    %341 = vmatpush1.msra.mxu0 0.0
    %342 = vmatprep.subr.mxu0 0.0
    %343 = vmatpush1.msra.mxu0 0.0
    %344 = vmatprep.subr.mxu0 0.0
    %345 = vmatpush1.msra.mxu0 0.0
    %346 = vmatprep.subr.mxu0 0.0
    %347 = vmatpush1.msra.mxu0 0.0
    %348 = vmatprep.subr.mxu0 0.0
    %349 = vmatpush1.msra.mxu0 0.0
    %350 = vmatprep.subr.mxu0 0.0
    %351 = vmatpush1.msra.mxu0 0.0
    %352 = vmatprep.subr.mxu0 0.0
    %353 = vmatpush1.msra.mxu0 0.0
    %354 = vmatprep.subr.mxu0 0.0
    %355 = vmatpush1.msra.mxu0 0.0
    %356 = vmatprep.subr.mxu0 0.0
    %357 = vmatpush1.msra.mxu0 0.0
    %358 = vmatprep.subr.mxu0 0.0
    %359 = vmatpush1.msra.mxu0 0.0
    %360 = vmatprep.subr.mxu0 0.0
    %361 = vmatpush1.msra.mxu0 0.0
    %362 = vmatprep.mubr.f32.mxu0 0.0
    %363 = vmatmul.mubr.f32.gmra.mrb[0].mxu0 %v296
    %v364 = vpop.f32.mrb[0].mxu0
    %v365 = vadd.f32 0.0, %v364
    %v366 = vpop.f32.mrb[0].mxu0
    %367 = vdwg.mxu0
    %v368 = vcombine.high %v260, 0.0
    %v370 = vunpack.c.l.s4 1983009808
    %v371 = vunpack.c.0.s8 %v370
    %v372 = vlaneseq
    %v373 = vshrl.u32 %v372, 7
    %v374 = vsub.s32 %v371, %v373
    %v375 = vrot.slane %v260, %v374
    %v377 = vunpack.c.l.s4 1983009808
    %v378 = vunpack.c.0.s8 %v377
    %v379 = vlaneseq
    %v380 = vshrl.u32 %v379, 7
    %v381 = vsub.s32 %v378, %v380
    %v382 = vrot.slane %v368, %v381
    %v383 = vcombine.high %v365, 0.0
    %v385 = vunpack.c.l.s4 1983009808
    %v386 = vunpack.c.0.s8 %v385
    %v387 = vlaneseq
    %v388 = vshrl.u32 %v387, 7
    %v389 = vsub.s32 %v386, %v388
    %v390 = vrot.slane %v365, %v389
    %v392 = vunpack.c.l.s4 1983009808
    %v393 = vunpack.c.0.s8 %v392
    %v394 = vlaneseq
    %v395 = vshrl.u32 %v394, 7
    %v396 = vsub.s32 %v393, %v395
    %v397 = vrot.slane %v383, %v396
    %v398 = vcombine.low %v375, %v390
    %v399 = vcombine.high %v375, %v390
    %v401 = vunpack.c.l.s4 1934713408
    %v402 = vunpack.c.0.s8 %v401
    %v403 = vlaneseq
    %v404 = vshrl.u32 %v403, 7
    %v405 = vsub.s32 %v402, %v404
    %v406 = vrot.slane %v398, %v405
    %v408 = vunpack.c.l.s4 1934713408
    %v409 = vunpack.c.0.s8 %v408
    %v410 = vlaneseq
    %v411 = vshrl.u32 %v410, 7
    %v412 = vsub.s32 %v409, %v411
    %v413 = vrot.slane %v399, %v412
    %v414 = vcombine.low %v382, %v397
    %v415 = vcombine.high %v382, %v397
    %v417 = vunpack.c.l.s4 1934713408
    %v418 = vunpack.c.0.s8 %v417
    %v419 = vlaneseq
    %v420 = vshrl.u32 %v419, 7
    %v421 = vsub.s32 %v418, %v420
    %v422 = vrot.slane %v414, %v421
    %v424 = vunpack.c.l.s4 1934713408
    %v425 = vunpack.c.0.s8 %v424
    %v426 = vlaneseq
    %v427 = vshrl.u32 %v426, 7
    %v428 = vsub.s32 %v425, %v427
    %v429 = vrot.slane %v415, %v428
    %v430 = vcombine.high %v406, 0.0
    %v431 = vcombine.high %v413, 0.0
    %v432 = vcombine.high %v422, 0.0
    %v433 = vcombine.high %v429, 0.0
    %v434 = vld [vmem:[#allocation2] sm:$0xff]
    %v435 = vld [vmem:[#allocation2 + $0x8] sm:$0xff]
    %v436 = vld [vmem:[#allocation2 + $0x10] sm:$0xff]
    %v437 = vld [vmem:[#allocation2 + $0x18] sm:$0xff]
    %v438 = vld [vmem:[#allocation2 + $0x20] sm:$0xff]
    %v439 = vld [vmem:[#allocation2 + $0x28] sm:$0xff]
    %v440 = vld [vmem:[#allocation2 + $0x30] sm:$0xff]
    %v441 = vld [vmem:[#allocation2 + $0x38] sm:$0xff]
    %v442 = vld [vmem:[#allocation2 + $0x40] sm:$0xff]
    %v443 = vld [vmem:[#allocation2 + $0x48] sm:$0xff]
    %v444 = vld [vmem:[#allocation2 + $0x50] sm:$0xff]
    %v445 = vld [vmem:[#allocation2 + $0x58] sm:$0xff]
    %v446 = vld [vmem:[#allocation2 + $0x60] sm:$0xff]
    %v447 = vld [vmem:[#allocation2 + $0x68] sm:$0xff]
    %v448 = vld [vmem:[#allocation2 + $0x70] sm:$0xff]
    %v449 = vld [vmem:[#allocation2 + $0x78] sm:$0xff]
    %v450 = vld [vmem:[#allocation2 + $0x80] sm:$0xff]
    %v451 = vld [vmem:[#allocation2 + $0x88] sm:$0xff]
    %v452 = vld [vmem:[#allocation2 + $0x90] sm:$0xff]
    %v453 = vld [vmem:[#allocation2 + $0x98] sm:$0xff]
    %v454 = vld [vmem:[#allocation2 + $0xa0] sm:$0xff]
    %v455 = vld [vmem:[#allocation2 + $0xa8] sm:$0xff]
    %v456 = vld [vmem:[#allocation2 + $0xb0] sm:$0xff]
    %v457 = vld [vmem:[#allocation2 + $0xb8] sm:$0xff]
    %v458 = vld [vmem:[#allocation2 + $0xc0] sm:$0xff]
    %v459 = vld [vmem:[#allocation2 + $0xc8] sm:$0xff]
    %v460 = vld [vmem:[#allocation2 + $0xd0] sm:$0xff]
    %v461 = vld [vmem:[#allocation2 + $0xd8] sm:$0xff]
    %v462 = vld [vmem:[#allocation2 + $0xe0] sm:$0xff]
    %v463 = vld [vmem:[#allocation2 + $0xe8] sm:$0xff]
    %v464 = vld [vmem:[#allocation2 + $0xf0] sm:$0xff]
    %v465 = vld [vmem:[#allocation2 + $0xf8] sm:$0xff]
    %v467 = vsel %vm47, %v406, 0
    %469 = vmatprep.subr.mxu0 0.0
    %470 = vmatpush1.msra.mxu0 %v434
    %471 = vmatprep.subr.mxu0 0.0
    %472 = vmatpush1.msra.mxu0 %v435
    %473 = vmatprep.subr.mxu0 0.0
    %474 = vmatpush1.msra.mxu0 %v436
    %475 = vmatprep.subr.mxu0 0.0
    %476 = vmatpush1.msra.mxu0 %v437
    %477 = vmatprep.subr.mxu0 0.0
    %478 = vmatpush1.msra.mxu0 0.0
    %479 = vmatprep.subr.mxu0 0.0
    %480 = vmatpush1.msra.mxu0 0.0
    %481 = vmatprep.subr.mxu0 0.0
    %482 = vmatpush1.msra.mxu0 0.0
    %483 = vmatprep.subr.mxu0 0.0
    %484 = vmatpush1.msra.mxu0 0.0
    %485 = vmatprep.subr.mxu0 0.0
    %486 = vmatpush1.msra.mxu0 0.0
    %487 = vmatprep.subr.mxu0 0.0
    %488 = vmatpush1.msra.mxu0 0.0
    %489 = vmatprep.subr.mxu0 0.0
    %490 = vmatpush1.msra.mxu0 0.0
    %491 = vmatprep.subr.mxu0 0.0
    %492 = vmatpush1.msra.mxu0 0.0
    %493 = vmatprep.subr.mxu0 0.0
    %494 = vmatpush1.msra.mxu0 0.0
    %495 = vmatprep.subr.mxu0 0.0
    %496 = vmatpush1.msra.mxu0 0.0
    %497 = vmatprep.subr.mxu0 0.0
    %498 = vmatpush1.msra.mxu0 0.0
    %499 = vmatprep.subr.mxu0 0.0
    %500 = vmatpush1.msra.mxu0 0.0
    %501 = vmatprep.subr.mxu0 0.0
    %502 = vmatpush1.msra.mxu0 0.0
    %503 = vmatprep.subr.mxu0 0.0
    %504 = vmatpush1.msra.mxu0 0.0
    %505 = vmatprep.subr.mxu0 0.0
    %506 = vmatpush1.msra.mxu0 0.0
    %507 = vmatprep.subr.mxu0 0.0
    %508 = vmatpush1.msra.mxu0 0.0
    %509 = vmatprep.subr.mxu0 0.0
    %510 = vmatpush1.msra.mxu0 0.0
    %511 = vmatprep.subr.mxu0 0.0
    %512 = vmatpush1.msra.mxu0 0.0
    %513 = vmatprep.subr.mxu0 0.0
    %514 = vmatpush1.msra.mxu0 0.0
    %515 = vmatprep.subr.mxu0 0.0
    %516 = vmatpush1.msra.mxu0 0.0
    %517 = vmatprep.subr.mxu0 0.0
    %518 = vmatpush1.msra.mxu0 0.0
    %519 = vmatprep.subr.mxu0 0.0
    %520 = vmatpush1.msra.mxu0 0.0
    %521 = vmatprep.subr.mxu0 0.0
    %522 = vmatpush1.msra.mxu0 0.0
    %523 = vmatprep.subr.mxu0 0.0
    %524 = vmatpush1.msra.mxu0 0.0
    %525 = vmatprep.subr.mxu0 0.0
    %526 = vmatpush1.msra.mxu0 0.0
    %527 = vmatprep.subr.mxu0 0.0
    %528 = vmatpush1.msra.mxu0 0.0
    %529 = vmatprep.subr.mxu0 0.0
    %530 = vmatpush1.msra.mxu0 0.0
    %531 = vmatprep.subr.mxu0 0.0
    %532 = vmatpush1.msra.mxu0 0.0
    %533 = vmatprep.mubr.f32.mxu0 0.0
    %534 = vmatmul.mubr.f32.gmra.mrb[0].mxu0 %v467
    %v535 = vpop.f32.mrb[0].mxu0
    %v536 = vadd.f32 0.0, %v535
    %v537 = vpop.f32.mrb[0].mxu0
    %538 = vdwg.mxu0
    %v540 = vsel %vm47, %v430, 0
    %542 = vmatprep.subr.mxu0 0.0
    %543 = vmatpush1.msra.mxu0 %v438
    %544 = vmatprep.subr.mxu0 0.0
    %545 = vmatpush1.msra.mxu0 %v439
    %546 = vmatprep.subr.mxu0 0.0
    %547 = vmatpush1.msra.mxu0 %v440
    %548 = vmatprep.subr.mxu0 0.0
    %549 = vmatpush1.msra.mxu0 %v441
    %550 = vmatprep.subr.mxu0 0.0
    %551 = vmatpush1.msra.mxu0 0.0
    %552 = vmatprep.subr.mxu0 0.0
    %553 = vmatpush1.msra.mxu0 0.0
    %554 = vmatprep.subr.mxu0 0.0
    %555 = vmatpush1.msra.mxu0 0.0
    %556 = vmatprep.subr.mxu0 0.0
    %557 = vmatpush1.msra.mxu0 0.0
    %558 = vmatprep.subr.mxu0 0.0
    %559 = vmatpush1.msra.mxu0 0.0
    %560 = vmatprep.subr.mxu0 0.0
    %561 = vmatpush1.msra.mxu0 0.0
    %562 = vmatprep.subr.mxu0 0.0
    %563 = vmatpush1.msra.mxu0 0.0
    %564 = vmatprep.subr.mxu0 0.0
    %565 = vmatpush1.msra.mxu0 0.0
    %566 = vmatprep.subr.mxu0 0.0
    %567 = vmatpush1.msra.mxu0 0.0
    %568 = vmatprep.subr.mxu0 0.0
    %569 = vmatpush1.msra.mxu0 0.0
    %570 = vmatprep.subr.mxu0 0.0
    %571 = vmatpush1.msra.mxu0 0.0
    %572 = vmatprep.subr.mxu0 0.0
    %573 = vmatpush1.msra.mxu0 0.0
    %574 = vmatprep.subr.mxu0 0.0
    %575 = vmatpush1.msra.mxu0 0.0
    %576 = vmatprep.subr.mxu0 0.0
    %577 = vmatpush1.msra.mxu0 0.0
    %578 = vmatprep.subr.mxu0 0.0
    %579 = vmatpush1.msra.mxu0 0.0
    %580 = vmatprep.subr.mxu0 0.0
    %581 = vmatpush1.msra.mxu0 0.0
    %582 = vmatprep.subr.mxu0 0.0
    %583 = vmatpush1.msra.mxu0 0.0
    %584 = vmatprep.subr.mxu0 0.0
    %585 = vmatpush1.msra.mxu0 0.0
    %586 = vmatprep.subr.mxu0 0.0
    %587 = vmatpush1.msra.mxu0 0.0
    %588 = vmatprep.subr.mxu0 0.0
    %589 = vmatpush1.msra.mxu0 0.0
    %590 = vmatprep.subr.mxu0 0.0
    %591 = vmatpush1.msra.mxu0 0.0
    %592 = vmatprep.subr.mxu0 0.0
    %593 = vmatpush1.msra.mxu0 0.0
    %594 = vmatprep.subr.mxu0 0.0
    %595 = vmatpush1.msra.mxu0 0.0
    %596 = vmatprep.subr.mxu0 0.0
    %597 = vmatpush1.msra.mxu0 0.0
    %598 = vmatprep.subr.mxu0 0.0
    %599 = vmatpush1.msra.mxu0 0.0
    %600 = vmatprep.subr.mxu0 0.0
    %601 = vmatpush1.msra.mxu0 0.0
    %602 = vmatprep.subr.mxu0 0.0
    %603 = vmatpush1.msra.mxu0 0.0
    %604 = vmatprep.subr.mxu0 0.0
    %605 = vmatpush1.msra.mxu0 0.0
    %606 = vmatprep.mubr.f32.mxu0 0.0
    %607 = vmatmul.mubr.f32.gmra.mrb[0].mxu0 %v540
    %v608 = vpop.f32.mrb[0].mxu0
    %v609 = vadd.f32 0.0, %v608
    %v610 = vpop.f32.mrb[0].mxu0
    %611 = vdwg.mxu0
    %v613 = vsel %vm47, %v413, 0
    %615 = vmatprep.subr.mxu0 0.0
    %616 = vmatpush1.msra.mxu0 %v442
    %617 = vmatprep.subr.mxu0 0.0
    %618 = vmatpush1.msra.mxu0 %v443
    %619 = vmatprep.subr.mxu0 0.0
    %620 = vmatpush1.msra.mxu0 %v444
    %621 = vmatprep.subr.mxu0 0.0
    %622 = vmatpush1.msra.mxu0 %v445
    %623 = vmatprep.subr.mxu0 0.0
    %624 = vmatpush1.msra.mxu0 0.0
    %625 = vmatprep.subr.mxu0 0.0
    %626 = vmatpush1.msra.mxu0 0.0
    %627 = vmatprep.subr.mxu0 0.0
    %628 = vmatpush1.msra.mxu0 0.0
    %629 = vmatprep.subr.mxu0 0.0
    %630 = vmatpush1.msra.mxu0 0.0
    %631 = vmatprep.subr.mxu0 0.0
    %632 = vmatpush1.msra.mxu0 0.0
    %633 = vmatprep.subr.mxu0 0.0
    %634 = vmatpush1.msra.mxu0 0.0
    %635 = vmatprep.subr.mxu0 0.0
    %636 = vmatpush1.msra.mxu0 0.0
    %637 = vmatprep.subr.mxu0 0.0
    %638 = vmatpush1.msra.mxu0 0.0
    %639 = vmatprep.subr.mxu0 0.0
    %640 = vmatpush1.msra.mxu0 0.0
    %641 = vmatprep.subr.mxu0 0.0
    %642 = vmatpush1.msra.mxu0 0.0
    %643 = vmatprep.subr.mxu0 0.0
    %644 = vmatpush1.msra.mxu0 0.0
    %645 = vmatprep.subr.mxu0 0.0
    %646 = vmatpush1.msra.mxu0 0.0
    %647 = vmatprep.subr.mxu0 0.0
    %648 = vmatpush1.msra.mxu0 0.0
    %649 = vmatprep.subr.mxu0 0.0
    %650 = vmatpush1.msra.mxu0 0.0
    %651 = vmatprep.subr.mxu0 0.0
    %652 = vmatpush1.msra.mxu0 0.0
    %653 = vmatprep.subr.mxu0 0.0
    %654 = vmatpush1.msra.mxu0 0.0
    %655 = vmatprep.subr.mxu0 0.0
    %656 = vmatpush1.msra.mxu0 0.0
    %657 = vmatprep.subr.mxu0 0.0
    %658 = vmatpush1.msra.mxu0 0.0
    %659 = vmatprep.subr.mxu0 0.0
    %660 = vmatpush1.msra.mxu0 0.0
    %661 = vmatprep.subr.mxu0 0.0
    %662 = vmatpush1.msra.mxu0 0.0
    %663 = vmatprep.subr.mxu0 0.0
    %664 = vmatpush1.msra.mxu0 0.0
    %665 = vmatprep.subr.mxu0 0.0
    %666 = vmatpush1.msra.mxu0 0.0
    %667 = vmatprep.subr.mxu0 0.0
    %668 = vmatpush1.msra.mxu0 0.0
    %669 = vmatprep.subr.mxu0 0.0
    %670 = vmatpush1.msra.mxu0 0.0
    %671 = vmatprep.subr.mxu0 0.0
    %672 = vmatpush1.msra.mxu0 0.0
    %673 = vmatprep.subr.mxu0 0.0
    %674 = vmatpush1.msra.mxu0 0.0
    %675 = vmatprep.subr.mxu0 0.0
    %676 = vmatpush1.msra.mxu0 0.0
    %677 = vmatprep.subr.mxu0 0.0
    %678 = vmatpush1.msra.mxu0 0.0
    %679 = vmatprep.mubr.f32.mxu0 0.0
    %680 = vmatmul.mubr.f32.gmra.mrb[0].mxu0 %v613
    %v681 = vpop.f32.mrb[0].mxu0
    %v682 = vadd.f32 0.0, %v681
    %v683 = vpop.f32.mrb[0].mxu0
    %684 = vdwg.mxu0
    %v686 = vsel %vm47, %v431, 0
    %688 = vmatprep.subr.mxu0 0.0
    %689 = vmatpush1.msra.mxu0 %v446
    %690 = vmatprep.subr.mxu0 0.0
    %691 = vmatpush1.msra.mxu0 %v447
    %692 = vmatprep.subr.mxu0 0.0
    %693 = vmatpush1.msra.mxu0 %v448
    %694 = vmatprep.subr.mxu0 0.0
    %695 = vmatpush1.msra.mxu0 %v449
    %696 = vmatprep.subr.mxu0 0.0
    %697 = vmatpush1.msra.mxu0 0.0
    %698 = vmatprep.subr.mxu0 0.0
    %699 = vmatpush1.msra.mxu0 0.0
    %700 = vmatprep.subr.mxu0 0.0
    %701 = vmatpush1.msra.mxu0 0.0
    %702 = vmatprep.subr.mxu0 0.0
    %703 = vmatpush1.msra.mxu0 0.0
    %704 = vmatprep.subr.mxu0 0.0
    %705 = vmatpush1.msra.mxu0 0.0
    %706 = vmatprep.subr.mxu0 0.0
    %707 = vmatpush1.msra.mxu0 0.0
    %708 = vmatprep.subr.mxu0 0.0
    %709 = vmatpush1.msra.mxu0 0.0
    %710 = vmatprep.subr.mxu0 0.0
    %711 = vmatpush1.msra.mxu0 0.0
    %712 = vmatprep.subr.mxu0 0.0
    %713 = vmatpush1.msra.mxu0 0.0
    %714 = vmatprep.subr.mxu0 0.0
    %715 = vmatpush1.msra.mxu0 0.0
    %716 = vmatprep.subr.mxu0 0.0
    %717 = vmatpush1.msra.mxu0 0.0
    %718 = vmatprep.subr.mxu0 0.0
    %719 = vmatpush1.msra.mxu0 0.0
    %720 = vmatprep.subr.mxu0 0.0
    %721 = vmatpush1.msra.mxu0 0.0
    %722 = vmatprep.subr.mxu0 0.0
    %723 = vmatpush1.msra.mxu0 0.0
    %724 = vmatprep.subr.mxu0 0.0
    %725 = vmatpush1.msra.mxu0 0.0
    %726 = vmatprep.subr.mxu0 0.0
    %727 = vmatpush1.msra.mxu0 0.0
    %728 = vmatprep.subr.mxu0 0.0
    %729 = vmatpush1.msra.mxu0 0.0
    %730 = vmatprep.subr.mxu0 0.0
    %731 = vmatpush1.msra.mxu0 0.0
    %732 = vmatprep.subr.mxu0 0.0
    %733 = vmatpush1.msra.mxu0 0.0
    %734 = vmatprep.subr.mxu0 0.0
    %735 = vmatpush1.msra.mxu0 0.0
    %736 = vmatprep.subr.mxu0 0.0
    %737 = vmatpush1.msra.mxu0 0.0
    %738 = vmatprep.subr.mxu0 0.0
    %739 = vmatpush1.msra.mxu0 0.0
    %740 = vmatprep.subr.mxu0 0.0
    %741 = vmatpush1.msra.mxu0 0.0
    %742 = vmatprep.subr.mxu0 0.0
    %743 = vmatpush1.msra.mxu0 0.0
    %744 = vmatprep.subr.mxu0 0.0
    %745 = vmatpush1.msra.mxu0 0.0
    %746 = vmatprep.subr.mxu0 0.0
    %747 = vmatpush1.msra.mxu0 0.0
    %748 = vmatprep.subr.mxu0 0.0
    %749 = vmatpush1.msra.mxu0 0.0
    %750 = vmatprep.subr.mxu0 0.0
    %751 = vmatpush1.msra.mxu0 0.0
    %752 = vmatprep.mubr.f32.mxu0 0.0
    %753 = vmatmul.mubr.f32.gmra.mrb[0].mxu0 %v686
    %v754 = vpop.f32.mrb[0].mxu0
    %v755 = vadd.f32 0.0, %v754
    %v756 = vpop.f32.mrb[0].mxu0
    %757 = vdwg.mxu0
    %v759 = vsel %vm47, %v422, 0
    %761 = vmatprep.subr.mxu0 0.0
    %762 = vmatpush1.msra.mxu0 %v450
    %763 = vmatprep.subr.mxu0 0.0
    %764 = vmatpush1.msra.mxu0 %v451
    %765 = vmatprep.subr.mxu0 0.0
    %766 = vmatpush1.msra.mxu0 %v452
    %767 = vmatprep.subr.mxu0 0.0
    %768 = vmatpush1.msra.mxu0 %v453
    %769 = vmatprep.subr.mxu0 0.0
    %770 = vmatpush1.msra.mxu0 0.0
    %771 = vmatprep.subr.mxu0 0.0
    %772 = vmatpush1.msra.mxu0 0.0
    %773 = vmatprep.subr.mxu0 0.0
    %774 = vmatpush1.msra.mxu0 0.0
    %775 = vmatprep.subr.mxu0 0.0
    %776 = vmatpush1.msra.mxu0 0.0
    %777 = vmatprep.subr.mxu0 0.0
    %778 = vmatpush1.msra.mxu0 0.0
    %779 = vmatprep.subr.mxu0 0.0
    %780 = vmatpush1.msra.mxu0 0.0
    %781 = vmatprep.subr.mxu0 0.0
    %782 = vmatpush1.msra.mxu0 0.0
    %783 = vmatprep.subr.mxu0 0.0
    %784 = vmatpush1.msra.mxu0 0.0
    %785 = vmatprep.subr.mxu0 0.0
    %786 = vmatpush1.msra.mxu0 0.0
    %787 = vmatprep.subr.mxu0 0.0
    %788 = vmatpush1.msra.mxu0 0.0
    %789 = vmatprep.subr.mxu0 0.0
    %790 = vmatpush1.msra.mxu0 0.0
    %791 = vmatprep.subr.mxu0 0.0
    %792 = vmatpush1.msra.mxu0 0.0
    %793 = vmatprep.subr.mxu0 0.0
    %794 = vmatpush1.msra.mxu0 0.0
    %795 = vmatprep.subr.mxu0 0.0
    %796 = vmatpush1.msra.mxu0 0.0
    %797 = vmatprep.subr.mxu0 0.0
    %798 = vmatpush1.msra.mxu0 0.0
    %799 = vmatprep.subr.mxu0 0.0
    %800 = vmatpush1.msra.mxu0 0.0
    %801 = vmatprep.subr.mxu0 0.0
    %802 = vmatpush1.msra.mxu0 0.0
    %803 = vmatprep.subr.mxu0 0.0
    %804 = vmatpush1.msra.mxu0 0.0
    %805 = vmatprep.subr.mxu0 0.0
    %806 = vmatpush1.msra.mxu0 0.0
    %807 = vmatprep.subr.mxu0 0.0
    %808 = vmatpush1.msra.mxu0 0.0
    %809 = vmatprep.subr.mxu0 0.0
    %810 = vmatpush1.msra.mxu0 0.0
    %811 = vmatprep.subr.mxu0 0.0
    %812 = vmatpush1.msra.mxu0 0.0
    %813 = vmatprep.subr.mxu0 0.0
    %814 = vmatpush1.msra.mxu0 0.0
    %815 = vmatprep.subr.mxu0 0.0
    %816 = vmatpush1.msra.mxu0 0.0
    %817 = vmatprep.subr.mxu0 0.0
    %818 = vmatpush1.msra.mxu0 0.0
    %819 = vmatprep.subr.mxu0 0.0
    %820 = vmatpush1.msra.mxu0 0.0
    %821 = vmatprep.subr.mxu0 0.0
    %822 = vmatpush1.msra.mxu0 0.0
    %823 = vmatprep.subr.mxu0 0.0
    %824 = vmatpush1.msra.mxu0 0.0
    %825 = vmatprep.mubr.f32.mxu0 0.0
    %826 = vmatmul.mubr.f32.gmra.mrb[0].mxu0 %v759
    %v827 = vpop.f32.mrb[0].mxu0
    %v828 = vadd.f32 0.0, %v827
    %v829 = vpop.f32.mrb[0].mxu0
    %830 = vdwg.mxu0
    %v832 = vsel %vm47, %v432, 0
    %834 = vmatprep.subr.mxu0 0.0
    %835 = vmatpush1.msra.mxu0 %v454
    %836 = vmatprep.subr.mxu0 0.0
    %837 = vmatpush1.msra.mxu0 %v455
    %838 = vmatprep.subr.mxu0 0.0
    %839 = vmatpush1.msra.mxu0 %v456
    %840 = vmatprep.subr.mxu0 0.0
    %841 = vmatpush1.msra.mxu0 %v457
    %842 = vmatprep.subr.mxu0 0.0
    %843 = vmatpush1.msra.mxu0 0.0
    %844 = vmatprep.subr.mxu0 0.0
    %845 = vmatpush1.msra.mxu0 0.0
    %846 = vmatprep.subr.mxu0 0.0
    %847 = vmatpush1.msra.mxu0 0.0
    %848 = vmatprep.subr.mxu0 0.0
    %849 = vmatpush1.msra.mxu0 0.0
    %850 = vmatprep.subr.mxu0 0.0
    %851 = vmatpush1.msra.mxu0 0.0
    %852 = vmatprep.subr.mxu0 0.0
    %853 = vmatpush1.msra.mxu0 0.0
    %854 = vmatprep.subr.mxu0 0.0
    %855 = vmatpush1.msra.mxu0 0.0
    %856 = vmatprep.subr.mxu0 0.0
    %857 = vmatpush1.msra.mxu0 0.0
    %858 = vmatprep.subr.mxu0 0.0
    %859 = vmatpush1.msra.mxu0 0.0
    %860 = vmatprep.subr.mxu0 0.0
    %861 = vmatpush1.msra.mxu0 0.0
    %862 = vmatprep.subr.mxu0 0.0
    %863 = vmatpush1.msra.mxu0 0.0
    %864 = vmatprep.subr.mxu0 0.0
    %865 = vmatpush1.msra.mxu0 0.0
    %866 = vmatprep.subr.mxu0 0.0
    %867 = vmatpush1.msra.mxu0 0.0
    %868 = vmatprep.subr.mxu0 0.0
    %869 = vmatpush1.msra.mxu0 0.0
    %870 = vmatprep.subr.mxu0 0.0
    %871 = vmatpush1.msra.mxu0 0.0
    %872 = vmatprep.subr.mxu0 0.0
    %873 = vmatpush1.msra.mxu0 0.0
    %874 = vmatprep.subr.mxu0 0.0
    %875 = vmatpush1.msra.mxu0 0.0
    %876 = vmatprep.subr.mxu0 0.0
    %877 = vmatpush1.msra.mxu0 0.0
    %878 = vmatprep.subr.mxu0 0.0
    %879 = vmatpush1.msra.mxu0 0.0
    %880 = vmatprep.subr.mxu0 0.0
    %881 = vmatpush1.msra.mxu0 0.0
    %882 = vmatprep.subr.mxu0 0.0
    %883 = vmatpush1.msra.mxu0 0.0
    %884 = vmatprep.subr.mxu0 0.0
    %885 = vmatpush1.msra.mxu0 0.0
    %886 = vmatprep.subr.mxu0 0.0
    %887 = vmatpush1.msra.mxu0 0.0
    %888 = vmatprep.subr.mxu0 0.0
    %889 = vmatpush1.msra.mxu0 0.0
    %890 = vmatprep.subr.mxu0 0.0
    %891 = vmatpush1.msra.mxu0 0.0
    %892 = vmatprep.subr.mxu0 0.0
    %893 = vmatpush1.msra.mxu0 0.0
    %894 = vmatprep.subr.mxu0 0.0
    %895 = vmatpush1.msra.mxu0 0.0
    %896 = vmatprep.subr.mxu0 0.0
    %897 = vmatpush1.msra.mxu0 0.0
    %898 = vmatprep.mubr.f32.mxu0 0.0
    %899 = vmatmul.mubr.f32.gmra.mrb[0].mxu0 %v832
    %v900 = vpop.f32.mrb[0].mxu0
    %v901 = vadd.f32 0.0, %v900
    %v902 = vpop.f32.mrb[0].mxu0
    %903 = vdwg.mxu0
    %v905 = vsel %vm47, %v429, 0
    %907 = vmatprep.subr.mxu0 0.0
    %908 = vmatpush1.msra.mxu0 %v458
    %909 = vmatprep.subr.mxu0 0.0
    %910 = vmatpush1.msra.mxu0 %v459
    %911 = vmatprep.subr.mxu0 0.0
    %912 = vmatpush1.msra.mxu0 %v460
    %913 = vmatprep.subr.mxu0 0.0
    %914 = vmatpush1.msra.mxu0 %v461
    %915 = vmatprep.subr.mxu0 0.0
    %916 = vmatpush1.msra.mxu0 0.0
    %917 = vmatprep.subr.mxu0 0.0
    %918 = vmatpush1.msra.mxu0 0.0
    %919 = vmatprep.subr.mxu0 0.0
    %920 = vmatpush1.msra.mxu0 0.0
    %921 = vmatprep.subr.mxu0 0.0
    %922 = vmatpush1.msra.mxu0 0.0
    %923 = vmatprep.subr.mxu0 0.0
    %924 = vmatpush1.msra.mxu0 0.0
    %925 = vmatprep.subr.mxu0 0.0
    %926 = vmatpush1.msra.mxu0 0.0
    %927 = vmatprep.subr.mxu0 0.0
    %928 = vmatpush1.msra.mxu0 0.0
    %929 = vmatprep.subr.mxu0 0.0
    %930 = vmatpush1.msra.mxu0 0.0
    %931 = vmatprep.subr.mxu0 0.0
    %932 = vmatpush1.msra.mxu0 0.0
    %933 = vmatprep.subr.mxu0 0.0
    %934 = vmatpush1.msra.mxu0 0.0
    %935 = vmatprep.subr.mxu0 0.0
    %936 = vmatpush1.msra.mxu0 0.0
    %937 = vmatprep.subr.mxu0 0.0
    %938 = vmatpush1.msra.mxu0 0.0
    %939 = vmatprep.subr.mxu0 0.0
    %940 = vmatpush1.msra.mxu0 0.0
    %941 = vmatprep.subr.mxu0 0.0
    %942 = vmatpush1.msra.mxu0 0.0
    %943 = vmatprep.subr.mxu0 0.0
    %944 = vmatpush1.msra.mxu0 0.0
    %945 = vmatprep.subr.mxu0 0.0
    %946 = vmatpush1.msra.mxu0 0.0
    %947 = vmatprep.subr.mxu0 0.0
    %948 = vmatpush1.msra.mxu0 0.0
    %949 = vmatprep.subr.mxu0 0.0
    %950 = vmatpush1.msra.mxu0 0.0
    %951 = vmatprep.subr.mxu0 0.0
    %952 = vmatpush1.msra.mxu0 0.0
    %953 = vmatprep.subr.mxu0 0.0
    %954 = vmatpush1.msra.mxu0 0.0
    %955 = vmatprep.subr.mxu0 0.0
    %956 = vmatpush1.msra.mxu0 0.0
    %957 = vmatprep.subr.mxu0 0.0
    %958 = vmatpush1.msra.mxu0 0.0
    %959 = vmatprep.subr.mxu0 0.0
    %960 = vmatpush1.msra.mxu0 0.0
    %961 = vmatprep.subr.mxu0 0.0
    %962 = vmatpush1.msra.mxu0 0.0
    %963 = vmatprep.subr.mxu0 0.0
    %964 = vmatpush1.msra.mxu0 0.0
    %965 = vmatprep.subr.mxu0 0.0
    %966 = vmatpush1.msra.mxu0 0.0
    %967 = vmatprep.subr.mxu0 0.0
    %968 = vmatpush1.msra.mxu0 0.0
    %969 = vmatprep.subr.mxu0 0.0
    %970 = vmatpush1.msra.mxu0 0.0
    %971 = vmatprep.mubr.f32.mxu0 0.0
    %972 = vmatmul.mubr.f32.gmra.mrb[0].mxu0 %v905
    %v973 = vpop.f32.mrb[0].mxu0
    %v974 = vadd.f32 0.0, %v973
    %v975 = vpop.f32.mrb[0].mxu0
    %976 = vdwg.mxu0
    %v978 = vsel %vm47, %v433, 0
    %980 = vmatprep.subr.mxu0 0.0
    %981 = vmatpush1.msra.mxu0 %v462
    %982 = vmatprep.subr.mxu0 0.0
    %983 = vmatpush1.msra.mxu0 %v463
    %984 = vmatprep.subr.mxu0 0.0
    %985 = vmatpush1.msra.mxu0 %v464
    %986 = vmatprep.subr.mxu0 0.0
    %987 = vmatpush1.msra.mxu0 %v465
    %988 = vmatprep.subr.mxu0 0.0
    %989 = vmatpush1.msra.mxu0 0.0
    %990 = vmatprep.subr.mxu0 0.0
    %991 = vmatpush1.msra.mxu0 0.0
    %992 = vmatprep.subr.mxu0 0.0
    %993 = vmatpush1.msra.mxu0 0.0
    %994 = vmatprep.subr.mxu0 0.0
    %995 = vmatpush1.msra.mxu0 0.0
    %996 = vmatprep.subr.mxu0 0.0
    %997 = vmatpush1.msra.mxu0 0.0
    %998 = vmatprep.subr.mxu0 0.0
    %999 = vmatpush1.msra.mxu0 0.0
    %1000 = vmatprep.subr.mxu0 0.0
    %1001 = vmatpush1.msra.mxu0 0.0
    %1002 = vmatprep.subr.mxu0 0.0
    %1003 = vmatpush1.msra.mxu0 0.0
    %1004 = vmatprep.subr.mxu0 0.0
    %1005 = vmatpush1.msra.mxu0 0.0
    %1006 = vmatprep.subr.mxu0 0.0
    %1007 = vmatpush1.msra.mxu0 0.0
    %1008 = vmatprep.subr.mxu0 0.0
    %1009 = vmatpush1.msra.mxu0 0.0
    %1010 = vmatprep.subr.mxu0 0.0
    %1011 = vmatpush1.msra.mxu0 0.0
    %1012 = vmatprep.subr.mxu0 0.0
    %1013 = vmatpush1.msra.mxu0 0.0
    %1014 = vmatprep.subr.mxu0 0.0
    %1015 = vmatpush1.msra.mxu0 0.0
    %1016 = vmatprep.subr.mxu0 0.0
    %1017 = vmatpush1.msra.mxu0 0.0
    %1018 = vmatprep.subr.mxu0 0.0
    %1019 = vmatpush1.msra.mxu0 0.0
    %1020 = vmatprep.subr.mxu0 0.0
    %1021 = vmatpush1.msra.mxu0 0.0
    %1022 = vmatprep.subr.mxu0 0.0
    %1023 = vmatpush1.msra.mxu0 0.0
    %1024 = vmatprep.subr.mxu0 0.0
    %1025 = vmatpush1.msra.mxu0 0.0
    %1026 = vmatprep.subr.mxu0 0.0
    %1027 = vmatpush1.msra.mxu0 0.0
    %1028 = vmatprep.subr.mxu0 0.0
    %1029 = vmatpush1.msra.mxu0 0.0
    %1030 = vmatprep.subr.mxu0 0.0
    %1031 = vmatpush1.msra.mxu0 0.0
    %1032 = vmatprep.subr.mxu0 0.0
    %1033 = vmatpush1.msra.mxu0 0.0
    %1034 = vmatprep.subr.mxu0 0.0
    %1035 = vmatpush1.msra.mxu0 0.0
    %1036 = vmatprep.subr.mxu0 0.0
    %1037 = vmatpush1.msra.mxu0 0.0
    %1038 = vmatprep.subr.mxu0 0.0
    %1039 = vmatpush1.msra.mxu0 0.0
    %1040 = vmatprep.subr.mxu0 0.0
    %1041 = vmatpush1.msra.mxu0 0.0
    %1042 = vmatprep.subr.mxu0 0.0
    %1043 = vmatpush1.msra.mxu0 0.0
    %1044 = vmatprep.mubr.f32.mxu0 0.0
    %1045 = vmatmul.mubr.f32.gmra.mrb[0].mxu0 %v978
    %v1046 = vpop.f32.mrb[0].mxu0
    %v1047 = vadd.f32 0.0, %v1046
    %v1048 = vpop.f32.mrb[0].mxu0
    %1049 = vdwg.mxu0
    %vm1050 = vcmask 1041408
    %v1051 = vsel %vm1050, %v536, 0.0
    %v1052 = vsel %vm1050, %v609, 0.0
    %v1053 = vadd.f32 %v1051, %v1052
    %v1054 = vsel %vm1050, %v682, 0.0
    %v1055 = vadd.f32 %v1053, %v1054
    %v1056 = vsel %vm1050, %v755, 0.0
    %v1057 = vadd.f32 %v1055, %v1056
    %v1058 = vsel %vm1050, %v828, 0.0
    %v1059 = vadd.f32 %v1057, %v1058
    %v1060 = vsel %vm1050, %v901, 0.0
    %v1061 = vadd.f32 %v1059, %v1060
    %v1062 = vsel %vm1050, %v974, 0.0
    %v1063 = vadd.f32 %v1061, %v1062
    %v1064 = vsel %vm1050, %v1047, 0.0
    %v1065 = vadd.f32 %v1063, %v1064
    %1066 = vst [vmem:[#allocation5] sm:$0x3] %v1065
    // Predicated region
    $region22: #{tpu_custom_call.1} parent=1 // pred_check
      _
    $region23: #{tpu_custom_call.1} parent=1 // pred_check_branch
      %1068 = sbr.rel (0) target = $region25
    $region24: #{tpu_custom_call.1} parent=1 // pred_region
      %s1070 = ssub.s32 32, 32
      %1071 = vsyncadd [#allocation4], %s1070
      %s1073 = sshll.u32 [#allocation5], 4
      %s1074 = int_to_ptr.vmem [resolvable:$true] %s1073
      %1076 = dma.vmem_to_hbm [thread:$0]  %s1074, 32, %s4, [#allocation4]
    $region25: #{tpu_custom_call.1} parent=1 // pred_fallthru
      _
    // Predicated region
    $region26: #{tpu_custom_call.1} parent=1 // pred_check
      _
    $region27: #{tpu_custom_call.1} parent=1 // pred_check_branch
      %1078 = sbr.rel (0) target = $region29
    $region28: #{tpu_custom_call.1} parent=1 // pred_region
      %1079 = dma.done [#allocation4], 32
    $region29: #{tpu_custom_call.1} parent=1 // pred_fallthru
      _
    %1080 = vsyncpa [#allocation3], 1
    %1081 = vsyncpa [#allocation4], 1

</llo_original>
